<compile_context>
chip_gen: v6e
topology: v6e:2x2x1
jax: 0.10.0
libtpu: 0.0.40
codegen_flags: <defaults>
</compile_context>

<pallas_src>
import functools

import jax
import jax.numpy as jnp
from jax import lax
from jax.experimental import pallas as pl
from jax.experimental.pallas import tpu as pltpu


def _round_up(x, m):
    return ((x + m - 1) // m) * m


# -------------------- Pallas kernel 1: batched Hungarian cost matrix (tiled over B, M) ------------
def _cost_kernel(pT_ref, t_ref, lgT_ref, out_ref):
    """cost[m, n] = ||pred[n] - tgt[m]||_2 - log(sigmoid(logit[n])) for one (batch, M-tile) block.

    Lane-dense layout: the padded query axis N sits on the 128-lane axis of every operand and of
    the output, so the HBM-bound cost write is full-width (no masked vst).  D is tiny, so the
    distance is pure VPU broadcast math (expanded form: p2 + t2 - 2*p.t), no MXU, no cross-lane
    reductions over D.
    """
    pT = pT_ref[...]          # [1, D, Np]   predicted states (transposed, padded)
    t = t_ref[...]            # [1, TM, D]   targets (padded)
    x = lgT_ref[...]          # [1, 1, Np]   existence logits (transposed, padded)
    D = pT.shape[1]

    p2 = None                 # [1, 1, Np]
    t2 = None                 # [1, TM, 1]
    cross = None              # [1, TM, Np]
    for d in range(D):        # D small & static -> fully unrolled VPU code
        pd = pT[:, d:d + 1, :]
        td = t[:, :, d:d + 1]
        p2 = pd * pd if p2 is None else p2 + pd * pd
        t2 = td * td if t2 is None else t2 + td * td
        cd = pd * td
        cross = cd if cross is None else cross + cd

    sq = jnp.maximum(p2 + t2 - 2.0 * cross, 0.0)
    dist = jnp.sqrt(sq)                                               # torch.cdist(p=2)
    # single-branch numerically-stable log(sigmoid(x)); transcendentals kept in f32
    log_sig = jnp.minimum(x, 0.0) - jnp.log1p(jnp.exp(-jnp.abs(x)))   # [1, 1, Np]
    # TODO(synk): emit bf16 here for v5e (HBM-write-bound) once matching tie-stability vs f32 is verified.
    out_ref[...] = (dist - log_sig).astype(out_ref.dtype)             # [1, TM, Np]


def hungarian_cost_matrix(pos_T, targets_pad, logits_T, tm):
    """pos_T [B,D,Np], targets_pad [B,Mp,D], logits_T [B,1,Np] -> cost [B,Mp,Np] (f32)."""
    B, D, Np = pos_T.shape
    Mp = targets_pad.shape[1]
    grid = (B, Mp // tm)

    block_bytes = 4 * (D * Np + tm * D + Np + tm * Np)
    vmem_limit = int(min(64 << 20, max(4 * block_bytes + (2 << 20), 16 << 20)))
    cost_est = pl.CostEstimate(
        flops=int(B * Mp * Np * (2 * D + 6)),
        transcendentals=int(B * (Mp * Np + 2 * Np)),
        bytes_accessed=int(4 * (B * D * Np + B * Mp * D + B * Np + B * Mp * Np)),
    )
    return pl.pallas_call(
        _cost_kernel,
        out_shape=jax.ShapeDtypeStruct((B, Mp, Np), jnp.float32),
        grid_spec=pltpu.PrefetchScalarGridSpec(
            num_scalar_prefetch=0,
            grid=grid,
            in_specs=[
                pl.BlockSpec((1, D, Np), lambda b, m: (b, 0, 0)),
                pl.BlockSpec((1, tm, D), lambda b, m: (b, m, 0)),
                pl.BlockSpec((1, 1, Np), lambda b, m: (b, 0, 0)),
            ],
            out_specs=pl.BlockSpec((1, tm, Np), lambda b, m: (b, m, 0)),
        ),
        compiler_params=pltpu.CompilerParams(
            dimension_semantics=("parallel", "parallel"),
            vmem_limit_bytes=vmem_limit,
        ),
        cost_estimate=cost_est,
    )(pos_T, targets_pad, logits_T)


# -------------------- Pallas kernel 2: fused L1 state loss + BCE-with-logits loss -----------------
def _fused_loss_kernel(logit_ref, tgtcls_ref, mask_ref, mpred_ref, mtgt_ref, out_ref,
                       *, inv_k, inv_n):
    # BCE-with-logits over all REAL query logits (mask zeroes padded lanes), reduction='mean'.
    x = logit_ref[...]                                    # [B, Np]
    y = tgtcls_ref[...]                                   # [B, Np]
    m = mask_ref[...]                                     # [B, Np] (1.0 on real queries)
    bce = (jnp.maximum(x, 0.0) - x * y + jnp.log1p(jnp.exp(-jnp.abs(x)))) * m
    # L1 state loss over matched pairs, flattened lane-dense; padded tail is zero on both sides.
    diff = jnp.abs(mpred_ref[...] - mtgt_ref[...])        # [1, Lp]
    out_ref[0] = jnp.sum(diff) * inv_k                    # detr_state
    out_ref[1] = jnp.sum(bce) * inv_n                     # detr_logits


def fused_losses(logits_pad, target_classes, logit_mask, mpred_flat, mtgt_flat, k, n_logits):
    kernel = functools.partial(_fused_loss_kernel,
                               inv_k=1.0 / float(max(k, 1)),
                               inv_n=1.0 / float(max(n_logits, 1)))
    return pl.pallas_call(
        kernel,
        out_shape=jax.ShapeDtypeStruct((2,), jnp.float32),
        in_specs=[pl.BlockSpec(memory_space=pltpu.MemorySpace.VMEM)] * 5,
        out_specs=pl.BlockSpec(memory_space=pltpu.MemorySpace.SMEM),
        cost_estimate=pl.CostEstimate(
            flops=int(5 * logits_pad.size + 2 * mpred_flat.size),
            transcendentals=int(2 * logits_pad.size),
            bytes_accessed=int(4 * (3 * logits_pad.size + 2 * mpred_flat.size)),
        ),
    )(logits_pad, target_classes, logit_mask, mpred_flat, mtgt_flat)


# -------------------- exact on-device linear sum assignment (Jonker-Volgenant) --------------------
def _lsa_rows_leq_cols(cost):
    """Exact LAP via shortest augmenting paths (same algorithm as scipy's linear_sum_assignment)
    for cost[nr, nc] with nr <= nc.  Returns col4row: int32[nr], the column assigned to each row.
    Fully on-device / jittable / vmappable (lax loops only).
    TODO(synk): move the augmenting-path inner loop into a Pallas kernel (cost tile resident in
    VMEM, duals/path in scratch) to cut per-HLO while_loop dispatch overhead at large M, N."""
    nr, nc = cost.shape
    inf = jnp.float32(jnp.inf)

    def solve_row(cur_row, state):
        u, v, col4row, row4col = state
        cur_row = jnp.asarray(cur_row, dtype=jnp.int32)

        # ---- Dijkstra-like search for the shortest augmenting path ----
        def sp_cond(c):
            return c[2] < 0                               # while sink == -1

        def sp_body(c):
            i, min_val, _, SR, SC, spc, path = c
            SR = SR.at[i].set(True)
            r = min_val + cost[i, :] - u[i] - v           # reduced costs      [nc]
            better = (r < spc) & jnp.logical_not(SC)
            spc = jnp.where(better, r, spc)
            path = jnp.where(better, i, path)
            masked = jnp.where(SC, inf, spc)
            j = jnp.argmin(masked).astype(jnp.int32)
            lowest = masked[j]
            SC = SC.at[j].set(True)
            unassigned = row4col[j] < 0
            sink = jnp.where(unassigned, j, jnp.full((), -1, jnp.int32))
            i = jnp.where(unassigned, i, row4col[j])
            return (i, lowest, sink, SR, SC, spc, path)

        init = (cur_row,
                jnp.zeros((), jnp.float32),
                jnp.full((), -1, jnp.int32),
                jnp.zeros((nr,), jnp.bool_),
                jnp.zeros((nc,), jnp.bool_),
                jnp.full((nc,), inf, dtype=jnp.float32),
                jnp.zeros((nc,), jnp.int32))
        _, min_val, sink, SR, SC, spc, path = lax.while_loop(sp_cond, sp_body, init)

        # ---- dual variable update ----
        u = u.at[cur_row].add(min_val)
        row_ids = jnp.arange(nr, dtype=jnp.int32)
        spc_assigned = spc[jnp.clip(col4row, 0, nc - 1)]
        mask_r = SR & (row_ids != cur_row)
        u = jnp.where(mask_r, u + (min_val - spc_assigned), u)
        v = jnp.where(SC, v - (min_val - spc), v)

        # ---- augment along the alternating path back to cur_row ----
        def aug_cond(c):
            return c[3]

        def aug_body(c):
            j, c4r, r4c, _ = c
            i = path[j]
            r4c = r4c.at[j].set(i)
            nxt = c4r[i]
            c4r = c4r.at[i].set(j)
            return (nxt, c4r, r4c, i != cur_row)

        _, col4row, row4col, _ = lax.while_loop(
            aug_cond, aug_body, (sink, col4row, row4col, jnp.ones((), jnp.bool_)))
        return (u, v, col4row, row4col)

    state0 = (jnp.zeros((nr,), jnp.float32),
              jnp.zeros((nc,), jnp.float32),
              jnp.full((nr,), -1, jnp.int32),
              jnp.full((nc,), -1, jnp.int32))
    _, _, col4row, _ = lax.fori_loop(0, nr, solve_row, state0)
    return col4row


def _match_single(cost_mn):
    """cost_mn [M, N] (targets x queries).  Returns (src queries sorted ascending, tgt indices),
    matching scipy's convention on the [N, M] (queries x targets) cost matrix."""
    col4row = _lsa_rows_leq_cols(cost_mn)                # [M] query per target
    order = jnp.argsort(col4row).astype(jnp.int32)
    return col4row[order].astype(jnp.int32), order


# -------------------- single-jit forward: cost kernel -> vmapped matcher -> loss kernel -----------
@jax.jit
def _mot_loss_detr(targets_arr, positions, logits):
    B, N, D = positions.shape
    M = targets_arr.shape[1]
    assert M <= N, "Hungarian matcher requires num_objects <= num_queries"

    # ---- padding for lane-dense kernels (N -> multiple of 128, M -> multiple of the M-tile) ----
    N_pad = _round_up(N, 128)
    tm = max(8, min(_round_up(M, 8), ((4 << 20) // (N_pad * 4)) // 8 * 8))   # M-tile (multiple of 8)
    M_pad = _round_up(M, tm)

    pos_pad = jnp.pad(positions, ((0, 0), (0, N_pad - N), (0, 0)))          # [B, Np, D]
    logit_pad = jnp.pad(logits[..., 0], ((0, 0), (0, N_pad - N)))           # [B, Np]
    tgt_pad = jnp.pad(targets_arr, ((0, 0), (0, M_pad - M), (0, 0)))        # [B, Mp, D]

    pos_T = jnp.transpose(pos_pad, (0, 2, 1))                               # [B, D, Np] (N -> lanes)
    logits_T = logit_pad[:, None, :]                                        # [B, 1, Np]

    cost_pad = hungarian_cost_matrix(pos_T, tgt_pad, logits_T, tm)          # [B, Mp, Np]
    cost_real = cost_pad[:, :M, :N]                                         # drop padded rows/cols

    # ---- exact Hungarian matching, vmapped over the batch, on sanitized stop-gradient cost ----
    cost_m = lax.stop_gradient(
        jnp.nan_to_num(cost_real, nan=1e30, posinf=1e30, neginf=-1e30))
    src_all, tgt_all = jax.vmap(_match_single)(cost_m)                      # [B, M] each

    src_idx = src_all.reshape(-1)                                           # [K]
    tgt_idx = tgt_all.reshape(-1)                                           # [K]
    batch_idx = jnp.repeat(jnp.arange(B, dtype=jnp.int32), M)               # [K]
    K = B * M

    # logits_loss targets (1 at matched queries) + matched gathers for state_loss
    target_classes = jnp.zeros((B, N_pad), jnp.float32).at[batch_idx, src_idx].set(1.0)
    logit_mask = jnp.pad(jnp.ones((B, N), jnp.float32), ((0, 0), (0, N_pad - N)))
    matched_pred = positions[batch_idx, src_idx]                            # [K, D]
    matched_tgt = targets_arr[batch_idx, tgt_idx]                           # [K, D]

    L = max(128, _round_up(K * D, 128))                                     # lane-dense flat length
    mpred_flat = jnp.pad(matched_pred.reshape(1, K * D), ((0, 0), (0, L - K * D)))
    mtgt_flat = jnp.pad(matched_tgt.reshape(1, K * D), ((0, 0), (0, L - K * D)))

    losses_vec = fused_losses(logit_pad, target_classes, logit_mask,
                              mpred_flat, mtgt_flat, K, B * N)
    losses = {"detr_state": losses_vec[0], "detr_logits": losses_vec[1]}
    indices = [(src_all[b], tgt_all[b]) for b in range(B)]
    return losses, indices


# -------------------- MotLoss forward (detr branch) --------------------
class MotLossPallas:
    """JAX/Pallas reimplementation of MotLoss.forward for loss_type='detr',
    prediction_target='position'.  MotLoss has no learnable parameters."""

    # TODO(synk): 'gospa'/'gospa_eval' branches, uncertainties (NLL state loss), intermediate /
    #             encoder auxiliary losses, and ragged per-batch target counts are not implemented;
    #             only the 'detr' branch with equal num_objects per batch element.

    def forward(self, targets, positions, logits, loss_type="detr"):
        assert loss_type == "detr"
        targets_arr = jnp.stack(targets, axis=0).astype(jnp.float32)   # [B, M, D]
        positions = positions.astype(jnp.float32)                      # [B, N, D]
        logits = logits.astype(jnp.float32)                            # [B, N, 1]
        return _mot_loss_detr(targets_arr, positions, logits)


if __name__ == "__main__":
    key = jax.random.PRNGKey(0)
    B, N, M, D = 2, 8, 4, 4   # batch, num_queries, num_objects per batch, state dim
    k1, k2, k3 = jax.random.split(key, 3)
    positions = jax.random.normal(k1, (B, N, D), dtype=jnp.float32)
    logits = jax.random.normal(k2, (B, N, 1), dtype=jnp.float32)
    targets = [jax.random.normal(k3, (M, D), dtype=jnp.float32) + 0.1 * b for b in range(B)]

    loss_module = MotLossPallas()
    losses, indices = loss_module.forward(targets, positions, logits, loss_type="detr")

    jax.block_until_ready(losses["detr_state"])
    jax.block_until_ready(losses["detr_logits"])
    _ = [jax.block_until_ready(i) for pair in indices for i in pair]
    assert bool(jnp.isfinite(losses["detr_state"])) and bool(jnp.isfinite(losses["detr_logits"]))
    print("KERNEL_OK")
</pallas_src>

<mosaic_0001>
module attributes {stable_mosaic.version = 11 : i64} {
  func.func @_cost_kernel(%arg0: i32, %arg1: i32, %arg2: memref<1x4x128xf32, #tpu.memory_space<vmem>>, %arg3: memref<1x8x4xf32, #tpu.memory_space<vmem>>, %arg4: memref<1x1x128xf32, #tpu.memory_space<vmem>>, %arg5: memref<1x8x128xf32, #tpu.memory_space<vmem>>) attributes {dimension_semantics = [#tpu.dimension_semantics<parallel>, #tpu.dimension_semantics<parallel>], iteration_bounds = array<i64: 2, 1>, scalar_prefetch = 0 : i64, scratch_operands = 0 : i64, tpu.core_type = #tpu.core_type<tc>, window_params = [{transform_indices = @transform_0, window_bounds = array<i64: 1, 4, 128>}, {transform_indices = @transform_1, window_bounds = array<i64: 1, 8, 4>}, {transform_indices = @transform_2, window_bounds = array<i64: 1, 1, 128>}, {transform_indices = @transform_3, window_bounds = array<i64: 1, 8, 128>}]} {
    %c0 = arith.constant 0 : index
    %c0_0 = arith.constant 0 : index
    %c0_1 = arith.constant 0 : index
    %0 = vector.load %arg2[%c0, %c0_0, %c0_1] : memref<1x4x128xf32, #tpu.memory_space<vmem>>, vector<1x4x128xf32>
    %c0_2 = arith.constant 0 : index
    %c0_3 = arith.constant 0 : index
    %c0_4 = arith.constant 0 : index
    %1 = vector.load %arg3[%c0_2, %c0_3, %c0_4] : memref<1x8x4xf32, #tpu.memory_space<vmem>>, vector<1x8x4xf32>
    %c0_5 = arith.constant 0 : index
    %c0_6 = arith.constant 0 : index
    %c0_7 = arith.constant 0 : index
    %2 = vector.load %arg4[%c0_5, %c0_6, %c0_7] : memref<1x1x128xf32, #tpu.memory_space<vmem>>, vector<1x1x128xf32>
    %3 = vector.extract_strided_slice %0 {offsets = [0, 0, 0], sizes = [1, 1, 128], strides = [1, 1, 1]} : vector<1x4x128xf32> to vector<1x1x128xf32>
    %4 = vector.extract_strided_slice %1 {offsets = [0, 0, 0], sizes = [1, 8, 1], strides = [1, 1, 1]} : vector<1x8x4xf32> to vector<1x8x1xf32>
    %5 = arith.mulf %3, %3 : vector<1x1x128xf32>
    %6 = arith.mulf %4, %4 : vector<1x8x1xf32>
    %7 = vector.broadcast %3 : vector<1x1x128xf32> to vector<1x8x128xf32>
    %8 = vector.broadcast %4 : vector<1x8x1xf32> to vector<1x8x128xf32>
    %9 = arith.mulf %7, %8 : vector<1x8x128xf32>
    %10 = vector.extract_strided_slice %0 {offsets = [0, 1, 0], sizes = [1, 1, 128], strides = [1, 1, 1]} : vector<1x4x128xf32> to vector<1x1x128xf32>
    %11 = vector.extract_strided_slice %1 {offsets = [0, 0, 1], sizes = [1, 8, 1], strides = [1, 1, 1]} : vector<1x8x4xf32> to vector<1x8x1xf32>
    %12 = arith.mulf %10, %10 : vector<1x1x128xf32>
    %13 = arith.addf %5, %12 : vector<1x1x128xf32>
    %14 = arith.mulf %11, %11 : vector<1x8x1xf32>
    %15 = arith.addf %6, %14 : vector<1x8x1xf32>
    %16 = vector.broadcast %10 : vector<1x1x128xf32> to vector<1x8x128xf32>
    %17 = vector.broadcast %11 : vector<1x8x1xf32> to vector<1x8x128xf32>
    %18 = arith.mulf %16, %17 : vector<1x8x128xf32>
    %19 = arith.addf %9, %18 : vector<1x8x128xf32>
    %20 = vector.extract_strided_slice %0 {offsets = [0, 2, 0], sizes = [1, 1, 128], strides = [1, 1, 1]} : vector<1x4x128xf32> to vector<1x1x128xf32>
    %21 = vector.extract_strided_slice %1 {offsets = [0, 0, 2], sizes = [1, 8, 1], strides = [1, 1, 1]} : vector<1x8x4xf32> to vector<1x8x1xf32>
    %22 = arith.mulf %20, %20 : vector<1x1x128xf32>
    %23 = arith.addf %13, %22 : vector<1x1x128xf32>
    %24 = arith.mulf %21, %21 : vector<1x8x1xf32>
    %25 = arith.addf %15, %24 : vector<1x8x1xf32>
    %26 = vector.broadcast %20 : vector<1x1x128xf32> to vector<1x8x128xf32>
    %27 = vector.broadcast %21 : vector<1x8x1xf32> to vector<1x8x128xf32>
    %28 = arith.mulf %26, %27 : vector<1x8x128xf32>
    %29 = arith.addf %19, %28 : vector<1x8x128xf32>
    %30 = vector.extract_strided_slice %0 {offsets = [0, 3, 0], sizes = [1, 1, 128], strides = [1, 1, 1]} : vector<1x4x128xf32> to vector<1x1x128xf32>
    %31 = vector.extract_strided_slice %1 {offsets = [0, 0, 3], sizes = [1, 8, 1], strides = [1, 1, 1]} : vector<1x8x4xf32> to vector<1x8x1xf32>
    %32 = arith.mulf %30, %30 : vector<1x1x128xf32>
    %33 = arith.addf %23, %32 : vector<1x1x128xf32>
    %34 = arith.mulf %31, %31 : vector<1x8x1xf32>
    %35 = arith.addf %25, %34 : vector<1x8x1xf32>
    %36 = vector.broadcast %30 : vector<1x1x128xf32> to vector<1x8x128xf32>
    %37 = vector.broadcast %31 : vector<1x8x1xf32> to vector<1x8x128xf32>
    %38 = arith.mulf %36, %37 : vector<1x8x128xf32>
    %39 = arith.addf %29, %38 : vector<1x8x128xf32>
    %40 = vector.broadcast %33 : vector<1x1x128xf32> to vector<1x8x128xf32>
    %41 = vector.broadcast %35 : vector<1x8x1xf32> to vector<1x8x128xf32>
    %42 = arith.addf %40, %41 : vector<1x8x128xf32>
    %cst = arith.constant 2.000000e+00 : f32
    %43 = vector.broadcast %cst : f32 to vector<1x8x128xf32>
    %44 = arith.mulf %43, %39 : vector<1x8x128xf32>
    %45 = arith.subf %42, %44 : vector<1x8x128xf32>
    %cst_8 = arith.constant 0.000000e+00 : f32
    %46 = vector.broadcast %cst_8 : f32 to vector<1x8x128xf32>
    %47 = arith.maximumf %45, %46 : vector<1x8x128xf32>
    %48 = math.sqrt %47 : vector<1x8x128xf32>
    %cst_9 = arith.constant 0.000000e+00 : f32
    %49 = vector.broadcast %cst_9 : f32 to vector<1x1x128xf32>
    %50 = arith.minimumf %2, %49 : vector<1x1x128xf32>
    %51 = math.absf %2 : vector<1x1x128xf32>
    %cst_10 = arith.constant 0.000000e+00 : f32
    %52 = vector.broadcast %cst_10 : f32 to vector<1x1x128xf32>
    %53 = arith.subf %52, %51 : vector<1x1x128xf32>
    %54 = math.exp %53 : vector<1x1x128xf32>
    %55 = math.log1p %54 : vector<1x1x128xf32>
    %56 = arith.subf %50, %55 : vector<1x1x128xf32>
    %57 = vector.broadcast %56 : vector<1x1x128xf32> to vector<1x8x128xf32>
    %58 = arith.subf %48, %57 : vector<1x8x128xf32>
    %c0_11 = arith.constant 0 : index
    %c0_12 = arith.constant 0 : index
    %c0_13 = arith.constant 0 : index
    %59 = vector.load %arg5[%c0_11, %c0_12, %c0_13] : memref<1x8x128xf32, #tpu.memory_space<vmem>>, vector<1x8x128xf32>
    tpu.vector_store %arg5[%c0_11, %c0_12, %c0_13], %58 {strides = array<i32>} : memref<1x8x128xf32, #tpu.memory_space<vmem>>, vector<1x8x128xf32>,
    return
  }
  func.func @transform_0(%arg0: i32, %arg1: i32) -> (i32, i32, i32) {
    %c0_i32 = arith.constant 0 : i32
    %c0_i32_0 = arith.constant 0 : i32
    %c0_i32_1 = arith.constant 0 : i32
    return %arg0, %c0_i32, %c0_i32_0 : i32, i32, i32
  }
  func.func @transform_1(%arg0: i32, %arg1: i32) -> (i32, i32, i32) {
    %c0_i32 = arith.constant 0 : i32
    %c0_i32_0 = arith.constant 0 : i32
    return %arg0, %arg1, %c0_i32 : i32, i32, i32
  }
  func.func @transform_2(%arg0: i32, %arg1: i32) -> (i32, i32, i32) {
    %c0_i32 = arith.constant 0 : i32
    %c0_i32_0 = arith.constant 0 : i32
    %c0_i32_1 = arith.constant 0 : i32
    return %arg0, %c0_i32, %c0_i32_0 : i32, i32, i32
  }
  func.func @transform_3(%arg0: i32, %arg1: i32) -> (i32, i32, i32) {
    %c0_i32 = arith.constant 0 : i32
    %c0_i32_0 = arith.constant 0 : i32
    return %arg0, %arg1, %c0_i32 : i32, i32, i32
  }
}

module attributes {stable_mosaic.version = 11 : i64} {
  func.func @_fused_loss_kernel(%arg0: memref<2x128xf32, #tpu.memory_space<vmem>>, %arg1: memref<2x128xf32, #tpu.memory_space<vmem>>, %arg2: memref<2x128xf32, #tpu.memory_space<vmem>>, %arg3: memref<1x128xf32, #tpu.memory_space<vmem>>, %arg4: memref<1x128xf32, #tpu.memory_space<vmem>>, %arg5: memref<2xf32, #tpu.memory_space<smem>>) attributes {dimension_semantics = [], scalar_prefetch = 0 : i64, scratch_operands = 0 : i64, tpu.core_type = #tpu.core_type<tc>} {
    %c0 = arith.constant 0 : index
    %c0_0 = arith.constant 0 : index
    %0 = vector.load %arg0[%c0, %c0_0] : memref<2x128xf32, #tpu.memory_space<vmem>>, vector<2x128xf32>
    %c0_1 = arith.constant 0 : index
    %c0_2 = arith.constant 0 : index
    %1 = vector.load %arg1[%c0_1, %c0_2] : memref<2x128xf32, #tpu.memory_space<vmem>>, vector<2x128xf32>
    %c0_3 = arith.constant 0 : index
    %c0_4 = arith.constant 0 : index
    %2 = vector.load %arg2[%c0_3, %c0_4] : memref<2x128xf32, #tpu.memory_space<vmem>>, vector<2x128xf32>
    %cst = arith.constant 0.000000e+00 : f32
    %3 = vector.broadcast %cst : f32 to vector<2x128xf32>
    %4 = arith.maximumf %0, %3 : vector<2x128xf32>
    %5 = arith.mulf %0, %1 : vector<2x128xf32>
    %6 = arith.subf %4, %5 : vector<2x128xf32>
    %7 = math.absf %0 : vector<2x128xf32>
    %cst_5 = arith.constant 0.000000e+00 : f32
    %8 = vector.broadcast %cst_5 : f32 to vector<2x128xf32>
    %9 = arith.subf %8, %7 : vector<2x128xf32>
    %10 = math.exp %9 : vector<2x128xf32>
    %11 = math.log1p %10 : vector<2x128xf32>
    %12 = arith.addf %6, %11 : vector<2x128xf32>
    %13 = arith.mulf %12, %2 : vector<2x128xf32>
    %c0_6 = arith.constant 0 : index
    %c0_7 = arith.constant 0 : index
    %14 = vector.load %arg3[%c0_6, %c0_7] : memref<1x128xf32, #tpu.memory_space<vmem>>, vector<1x128xf32>
    %c0_8 = arith.constant 0 : index
    %c0_9 = arith.constant 0 : index
    %15 = vector.load %arg4[%c0_8, %c0_9] : memref<1x128xf32, #tpu.memory_space<vmem>>, vector<1x128xf32>
    %16 = arith.subf %14, %15 : vector<1x128xf32>
    %17 = math.absf %16 : vector<1x128xf32>
    %18 = vector.shape_cast %17 : vector<1x128xf32> to vector<1x1x128xf32>
    %cst_10 = arith.constant dense<0.000000e+00> : vector<1xf32>
    %19 = vector.multi_reduction <add>, %18, %cst_10 [1, 2] : vector<1x1x128xf32> to vector<1xf32>
    %20 = vector.shape_cast %19 : vector<1xf32> to vector<1x1x1xf32>
    %21 = vector.extract %20[0, 0, 0] : f32 from vector<1x1x1xf32>
    %cst_11 = arith.constant 1.250000e-01 : f32
    %22 = arith.mulf %21, %cst_11 : f32
    %c0_12 = arith.constant 0 : index
    %23 = memref.load %arg5[%c0_12] : memref<2xf32, #tpu.memory_space<smem>>
    memref.store %22, %arg5[%c0_12] : memref<2xf32, #tpu.memory_space<smem>>
    %24 = vector.shape_cast %13 : vector<2x128xf32> to vector<1x2x128xf32>
    %cst_13 = arith.constant dense<0.000000e+00> : vector<1xf32>
    %25 = vector.multi_reduction <add>, %24, %cst_13 [1, 2] : vector<1x2x128xf32> to vector<1xf32>
    %26 = vector.shape_cast %25 : vector<1xf32> to vector<1x1x1xf32>
    %27 = vector.extract %26[0, 0, 0] : f32 from vector<1x1x1xf32>
    %cst_14 = arith.constant 6.250000e-02 : f32
    %28 = arith.mulf %27, %cst_14 : f32
    %c1 = arith.constant 1 : index
    %29 = memref.load %arg5[%c1] : memref<2xf32, #tpu.memory_space<smem>>
    memref.store %28, %arg5[%c1] : memref<2xf32, #tpu.memory_space<smem>>
    return
  }
}

</mosaic_0001>

<llo_original>
// kernel: custom-call.30
$region0: #{custom-call.30}
  %s0 = inlined_call_operand.vmem [shape: f32[2,4], index: 0, kind: output, shape index: {}]

// kernel: custom-call.31
$region0: #{custom-call.31}
  %s0 = inlined_call_operand.vmem [shape: f32[2,8], index: 0, kind: output, shape index: {}]

// kernel: _mot_loss_detr.2
$region0: #{_mot_loss_detr.2}
  #allocation0 [shape = 'u32[]', space=smem, size = 0x4, offset = 0x4, fixed_abs, tag = 'smem constant byte address 0x4 - core index']
  #allocation1 [shape = 'u32[144,128]{1,0:T(1,128)}', space=vmem, size = 0x12000, scoped, tag = 'internal scratch']
  %s0 = inlined_call_operand.vmem [shape: f32[2,4,128], index: 0, kind: input, shape index: {}]
  %s1 = inlined_call_operand.vmem [shape: f32[2,8,4], index: 1, kind: input, shape index: {}]
  %s2 = inlined_call_operand.vmem [shape: f32[2,1,128], index: 2, kind: input, shape index: {}]
  %s3 = inlined_call_operand.vmem [shape: f32[2,8,128], index: 3, kind: output, shape index: {}]
  %s4 = sld [smem:[#allocation0]]
  $region45: #{_mot_loss_detr.2} parent=0
    _
  %s6 = ssub.s32 1, %s4
  %s7 = scalar_select 0, %s6, %s4
  loop: start=0, step=1, limit=4
  $region2: #{_mot_loss_detr.2} parent=0 // loop_pre_header
    _
  $region3: #{_mot_loss_detr.2} parent=0 // loop_header
    %s9 = sphi 0, %s13
    %p10 = scmp.ge.s32.totalorder %s9, 4
    %s16 = sphi 0, %s28
    %s17 = sphi 0, %s24
    %s18 = sphi 0, %s16
    %s19 = sphi 0, %s17
    %s20 = sphi 0, %s18
    %s21 = sphi 0, %s19
    %s31 = sphi 0, %s33
    %s34 = sphi 0, %s31
    %s35 = sphi 0, %s34
    %s51 = sphi 0, %s35
    %s59 = sphi 0, %s61
    %s62 = sphi 0, %s59
    %s63 = sphi 0, %s62
    %s79 = sphi 0, %s63
    %s85 = sphi 0, %s87
    %s88 = sphi 0, %s85
    %s89 = sphi 0, %s88
    %s105 = sphi 0, %s89
    %s113 = sphi 0, %s115
    %s116 = sphi 0, %s113
    %s117 = sphi 0, %s116
    %s133 = sphi 0, %s117
  $region4: #{_mot_loss_detr.2} parent=0 // loop_header_branch
    %12 = sbr.rel (%p10) target = $region8
  $region5: #{_mot_loss_detr.2} parent=0 // loop_body
    %s14 = ssub.s32 %s9, 1
    %s15 = ssub.s32 %s9, 2
    %s22 = sadd.s32 1, %s17
    %p23 = scmp.ge.s32.totalorder %s22, 1
    %s24 = scalar_select %p23, 0, %s22
    %s25 = sadd.s32 1, %s16
    %s26 = scalar_select %p23, %s25, %s16
    %p27 = scmp.ge.s32.totalorder %s26, 2
    %s28 = scalar_select %p27, 0, %s26
    %s29 = ssub.s32 %s16, %s28
    %p30 = scmp.eq.s32.totalorder %s29, 0
    %s32 = sadd.s32 %s31, 1
    %s33 = scalar_select %p30, %s31, %s32
    %p36 = pneg %p30
    %p37 = scmp.eq.s32.totalorder %s9, 1
    %p38 = por %p36, %p37
    %p39 = scmp.ne.s32.totalorder %s31, %s34
    %p40 = scmp.eq.s32.totalorder %s9, 0
    %p41 = por %p39, %p40
    %p42 = scmp.ne.s32.totalorder %s31, %s34
    %p43 = scmp.eq.s32.totalorder %s14, 1
    %p44 = por %p42, %p43
    %p45 = scmp.ne.s32.totalorder %s34, %s35
    %p46 = scmp.eq.s32.totalorder %s14, 0
    %p47 = por %p45, %p46
    %p48 = scmp.ne.s32.totalorder %s34, %s35
    %p49 = scmp.eq.s32.totalorder %s15, 1
    %p50 = por %p48, %p49
    %p52 = scmp.ne.s32.totalorder %s35, %s51
    %p53 = scmp.eq.s32.totalorder %s15, 0
    %p54 = por %p52, %p53
    %s55 = ssub.s32 %s16, %s28
    %s56 = ssub.s32 %s17, %s24
    %s57 = sor.u32 %s55, %s56
    %p58 = scmp.eq.s32.totalorder %s57, 0
    %s60 = sadd.s32 %s59, 1
    %s61 = scalar_select %p58, %s59, %s60
    %p64 = pneg %p58
    %p65 = scmp.eq.s32.totalorder %s9, 1
    %p66 = por %p64, %p65
    %p67 = scmp.ne.s32.totalorder %s59, %s62
    %p68 = scmp.eq.s32.totalorder %s9, 0
    %p69 = por %p67, %p68
    %p70 = scmp.ne.s32.totalorder %s59, %s62
    %p71 = scmp.eq.s32.totalorder %s14, 1
    %p72 = por %p70, %p71
    %p73 = scmp.ne.s32.totalorder %s62, %s63
    %p74 = scmp.eq.s32.totalorder %s14, 0
    %p75 = por %p73, %p74
    %p76 = scmp.ne.s32.totalorder %s62, %s63
    %p77 = scmp.eq.s32.totalorder %s15, 1
    %p78 = por %p76, %p77
    %p80 = scmp.ne.s32.totalorder %s63, %s79
    %p81 = scmp.eq.s32.totalorder %s15, 0
    %p82 = por %p80, %p81
    %s83 = ssub.s32 %s16, %s28
    %p84 = scmp.eq.s32.totalorder %s83, 0
    %s86 = sadd.s32 %s85, 1
    %s87 = scalar_select %p84, %s85, %s86
    %p90 = pneg %p84
    %p91 = scmp.eq.s32.totalorder %s9, 1
    %p92 = por %p90, %p91
    %p93 = scmp.ne.s32.totalorder %s85, %s88
    %p94 = scmp.eq.s32.totalorder %s9, 0
    %p95 = por %p93, %p94
    %p96 = scmp.ne.s32.totalorder %s85, %s88
    %p97 = scmp.eq.s32.totalorder %s14, 1
    %p98 = por %p96, %p97
    %p99 = scmp.ne.s32.totalorder %s88, %s89
    %p100 = scmp.eq.s32.totalorder %s14, 0
    %p101 = por %p99, %p100
    %p102 = scmp.ne.s32.totalorder %s88, %s89
    %p103 = scmp.eq.s32.totalorder %s15, 1
    %p104 = por %p102, %p103
    %p106 = scmp.ne.s32.totalorder %s89, %s105
    %p107 = scmp.eq.s32.totalorder %s15, 0
    %p108 = por %p106, %p107
    %s109 = ssub.s32 %s16, %s28
    %s110 = ssub.s32 %s17, %s24
    %s111 = sor.u32 %s109, %s110
    %p112 = scmp.eq.s32.totalorder %s111, 0
    %s114 = sadd.s32 %s113, 1
    %s115 = scalar_select %p112, %s113, %s114
    %p118 = pneg %p112
    %p119 = scmp.eq.s32.totalorder %s9, 1
    %p120 = por %p118, %p119
    %p121 = scmp.ne.s32.totalorder %s113, %s116
    %p122 = scmp.eq.s32.totalorder %s9, 0
    %p123 = por %p121, %p122
    %p124 = scmp.ne.s32.totalorder %s113, %s116
    %p125 = scmp.eq.s32.totalorder %s14, 1
    %p126 = por %p124, %p125
    %p127 = scmp.ne.s32.totalorder %s116, %s117
    %p128 = scmp.eq.s32.totalorder %s14, 0
    %p129 = por %p127, %p128
    %p130 = scmp.ne.s32.totalorder %s116, %s117
    %p131 = scmp.eq.s32.totalorder %s15, 1
    %p132 = por %p130, %p131
    %p134 = scmp.ne.s32.totalorder %s117, %s133
    %p135 = scmp.eq.s32.totalorder %s15, 0
    %p136 = por %p134, %p135
    %p137 = scmp.le.s32.totalorder 1, %s9
    %p138 = scmp.lt.s32.totalorder %s9, 3
    %p139 = pnand %p137, %p138
    %p140 = pneg %p139
    // Predicated region
    $region9: #{_mot_loss_detr.2} parent=5 // pred_check
      _
    $region10: #{_mot_loss_detr.2} parent=5 // pred_check_branch
      %142 = sbr.rel (%p139) target = $region12
    $region11: #{_mot_loss_detr.2} parent=5 // pred_region
      %s143 = ssub.s32 %s9, 1
    $region12: #{_mot_loss_detr.2} parent=5 // pred_fallthru
      _
    %p144 = scmp.lt.s32.totalorder %s9, 2
    // Predicated region
    $region13: #{_mot_loss_detr.2} parent=5 // pred_check
      %p145 = pneg %p144
    $region14: #{_mot_loss_detr.2} parent=5 // pred_check_branch
      %147 = sbr.rel (%p145) target = $region16
    $region15: #{_mot_loss_detr.2} parent=5 // pred_region
      // Predicated region
      $region17: #{_mot_loss_detr.2} parent=15 // pred_check
        %p148 = pneg %p41
      $region18: #{_mot_loss_detr.2} parent=15 // pred_check_branch
        %150 = sbr.rel (%p148) target = $region20
      $region19: #{_mot_loss_detr.2} parent=15 // pred_region
        %p151 = scmp.lt.s32.totalorder %s16, 1
        %s152 = scalar_select %p151, %s16, 1
        %s153 = smul.addr %s152, 4
        %s154 = scalar_lea.vmem %s0, %s153
      $region20: #{_mot_loss_detr.2} parent=15 // pred_fallthru
        _
      // Predicated region
      $region21: #{_mot_loss_detr.2} parent=15 // pred_check
        %p155 = pneg %p69
      $region22: #{_mot_loss_detr.2} parent=15 // pred_check_branch
        %157 = sbr.rel (%p155) target = $region24
      $region23: #{_mot_loss_detr.2} parent=15 // pred_region
        %p158 = scmp.lt.s32.totalorder %s16, 1
        %s159 = scalar_select %p158, %s16, 1
        %p160 = scmp.lt.s32.totalorder %s17, 0
        %s161 = scalar_select %p160, %s17, 0
        %s162 = sadd.s32 %s161, %s159
        %s163 = smul.addr %s162, 8
        %s164 = scalar_lea.vmem %s1, %s163
      $region24: #{_mot_loss_detr.2} parent=15 // pred_fallthru
        _
      // Predicated region
      $region25: #{_mot_loss_detr.2} parent=15 // pred_check
        %p165 = pneg %p95
      $region26: #{_mot_loss_detr.2} parent=15 // pred_check_branch
        %167 = sbr.rel (%p165) target = $region28
      $region27: #{_mot_loss_detr.2} parent=15 // pred_region
        %p168 = scmp.lt.s32.totalorder %s16, 1
        %s169 = scalar_select %p168, %s16, 1
        %s170 = scalar_lea.vmem %s2, %s169
      $region28: #{_mot_loss_detr.2} parent=15 // pred_fallthru
        _
    $region16: #{_mot_loss_detr.2} parent=5 // pred_fallthru
      _
    %p171 = scmp.le.s32.totalorder 1, %s9
    %p172 = scmp.lt.s32.totalorder %s9, 3
    %p173 = pnand %p171, %p172
    %p174 = pneg %p173
    // Predicated region
    $region29: #{_mot_loss_detr.2} parent=5 // pred_check
      _
    $region30: #{_mot_loss_detr.2} parent=5 // pred_check_branch
      %176 = sbr.rel (%p173) target = $region32
    $region31: #{_mot_loss_detr.2} parent=5 // pred_region
      %s177 = ssub.s32 %s9, 1
      %p178 = scmp.lt.s32.totalorder %s18, 1
      %s179 = scalar_select %p178, %s18, 1
      %s180 = smul.addr %s179, 4
      %s181 = scalar_lea.vmem %s0, %s180
      %p182 = pneg %p47
      %p183 = pneg %p44
      %p184 = scmp.lt.s32.totalorder %s18, 1
      %s185 = scalar_select %p184, %s18, 1
      %p186 = scmp.lt.s32.totalorder %s19, 0
      %s187 = scalar_select %p186, %s19, 0
      %s188 = sadd.s32 %s187, %s185
      %s189 = smul.addr %s188, 8
      %s190 = scalar_lea.vmem %s1, %s189
      %p191 = pneg %p75
      %p192 = pneg %p72
      %p193 = scmp.lt.s32.totalorder %s18, 1
      %s194 = scalar_select %p193, %s18, 1
      %s195 = scalar_lea.vmem %s2, %s194
      %p196 = pneg %p101
      %p197 = pneg %p98
      %p198 = pneg %p129
      %p199 = pneg %p126
      %p200 = scmp.lt.s32.totalorder %s18, 1
      %s201 = scalar_select %p200, %s18, 1
      %p202 = scmp.lt.s32.totalorder %s19, 0
      %s203 = scalar_select %p202, %s19, 0
      %s204 = sadd.s32 %s203, %s201
      %s205 = smul.addr %s204, 8
      %s206 = scalar_lea.vmem %s3, %s205
      %p207 = scmp.lt.s32.totalorder %s18, 1
      %s208 = scalar_select %p207, %s18, 1
      %s209 = smul.addr %s208, 4
      %s210 = scalar_lea.vmem %s0, %s209
      %p211 = scmp.lt.s32.totalorder %s18, 1
      %s212 = scalar_select %p211, %s18, 1
      %p213 = scmp.lt.s32.totalorder %s19, 0
      %s214 = scalar_select %p213, %s19, 0
      %s215 = sadd.s32 %s214, %s212
      %s216 = smul.addr %s215, 8
      %s217 = scalar_lea.vmem %s1, %s216
      %p218 = scmp.lt.s32.totalorder %s18, 1
      %s219 = scalar_select %p218, %s18, 1
      %s220 = scalar_lea.vmem %s2, %s219
      %p221 = scmp.lt.s32.totalorder %s18, 1
      %s222 = scalar_select %p221, %s18, 1
      %p223 = scmp.lt.s32.totalorder %s19, 0
      %s224 = scalar_select %p223, %s19, 0
      %s225 = sadd.s32 %s224, %s222
      %s226 = smul.addr %s225, 8
      %s227 = scalar_lea.vmem %s3, %s226
      %v228 = vld [vmem:[%s210] sm:$0xf]
      %v229 = vld [vmem:[%s217] sm:$0xff]
      %v230 = vld [vmem:[%s220] sm:$0x1]
      %v231 = vmul.f32 %v228, %v228
      %v232 = vmul.f32 %v229, %v229
      %v233 = vlaneseq
      %v234 = vshrl.u32 %v233, 7
      %v235 = vsub.s32 0, %v234
      %v236 = vrot.slane %v228, %v235
      %238 = vset.pattern.permute.xlu0 0
      %239 = vperm.xlu0 %238, %v229
      %v240 = vpop.permute.xlu0 %239
      %v242 = vmul.f32 %v236, %v240
      %v244 = vrot.slane %v231, 1
      %v246 = vadd.f32 %v231, %v244
      %248 = vrot.lane.b32.xlu0 %v232, 127
      %v249 = vpop.permute.xlu0 %248
      %v251 = vadd.f32 %v232, %v249
      %v252 = vlaneseq
      %v253 = vshrl.u32 %v252, 7
      %v254 = vsub.s32 1, %v253
      %v255 = vrot.slane %v228, %v254
      %256 = vset.pattern.permute.xlu0 1
      %257 = vperm.xlu0 %256, %v229
      %v258 = vpop.permute.xlu0 %257
      %v260 = vmul.f32 %v255, %v258
      %v261 = vadd.f32 %v242, %v260
      %v262 = vrot.slane %v231, 2
      %v264 = vadd.f32 %v246, %v262
      %265 = vrot.lane.b32.xlu0 %v232, 126
      %v266 = vpop.permute.xlu0 %265
      %v268 = vadd.f32 %v251, %v266
      %v269 = vlaneseq
      %v270 = vshrl.u32 %v269, 7
      %v271 = vsub.s32 2, %v270
      %v272 = vrot.slane %v228, %v271
      %273 = vset.pattern.permute.xlu0 2
      %274 = vperm.xlu0 %273, %v229
      %v275 = vpop.permute.xlu0 %274
      %v277 = vmul.f32 %v272, %v275
      %v278 = vadd.f32 %v261, %v277
      %v279 = vrot.slane %v231, 3
      %v281 = vadd.f32 %v264, %v279
      %282 = vrot.lane.b32.xlu0 %v232, 125
      %v283 = vpop.permute.xlu0 %282
      %v285 = vadd.f32 %v268, %v283
      %v286 = vlaneseq
      %v287 = vshrl.u32 %v286, 7
      %v288 = vsub.s32 3, %v287
      %v289 = vrot.slane %v228, %v288
      %290 = vset.pattern.permute.xlu0 3
      %291 = vperm.xlu0 %290, %v229
      %v292 = vpop.permute.xlu0 %291
      %v294 = vmul.f32 %v289, %v292
      %v295 = vadd.f32 %v278, %v294
      %v296 = vlaneseq
      %v297 = vshrl.u32 %v296, 7
      %v298 = vsub.s32 0, %v297
      %v299 = vrot.slane %v281, %v298
      %301 = vset.pattern.permute.xlu0 0
      %302 = vperm.xlu0 %301, %v285
      %v303 = vpop.permute.xlu0 %302
      %v305 = vadd.f32 %v299, %v303
      %v306 = vmul.f32 %v295, 2.0
      %v307 = vsub.f32 %v305, %v306
      %v308 = vmax.f32 %v307, 0.0
      %v309 = vrsqrt.pop %v308
      %v310 = vmul.f32 %v308, %v309
      %vm311 = vcmp.eq.f32.partialorder %v308, inf
      %v312 = vsel %vm311, %v308, %v310
      %vm313 = vcmp.eq.f32.partialorder %v308, 0.0
      %v314 = vand.u32 %v308, 2147483648
      %v315 = vsel %vm313, %v314, %v312
      %v316 = vmin.f32 %v230, 0.0
      %v317 = vand.u32 2147483647, %v230
      %v318 = vsub.f32 0.0, %v317
      %v319 = vmul.f32 %v318, 1.442695
      %v320 = vpow.pop %v319
      %v321 = vadd.f32 %v320, 1.0
      %v322 = vlog2.pop %v321
      %v323 = vmul.f32 %v322, 0.6931472
      %v324 = vmul.f32 -0.5, %v320
      %v325 = vadd.f32 %v324, 1.0
      %v326 = vmul.f32 %v325, %v320
      %v327 = vand.u32 2147483647, %v320
      %vm328 = vcmp.lt.f32.partialorder %v327, 0.0004427343
      %v329 = vsel %vm328, %v326, %v323
      %v330 = vsub.f32 %v316, %v329
      %v332 = vlaneseq
      %v333 = vshrl.u32 %v332, 7
      %v334 = vsub.s32 0, %v333
      %v335 = vrot.slane %v330, %v334
      %v337 = vsub.f32 %v315, %v335
      %338 = vst [vmem:[%s227] sm:$0xff] %v337
      %p339 = scmp.lt.s32.totalorder %s18, 1
      %s340 = scalar_select %p339, %s18, 1
      %p341 = scmp.lt.s32.totalorder %s19, 0
      %s342 = scalar_select %p341, %s19, 0
      %s343 = sadd.s32 %s342, %s340
      %s344 = smul.addr %s343, 8
      %s345 = scalar_lea.vmem %s3, %s344
      // Predicated region
      $region33: #{_mot_loss_detr.2} parent=31 // pred_check
        %p346 = pneg %p126
      $region34: #{_mot_loss_detr.2} parent=31 // pred_check_branch
        %348 = sbr.rel (%p346) target = $region36
      $region35: #{_mot_loss_detr.2} parent=31 // pred_region
        _
      $region36: #{_mot_loss_detr.2} parent=31 // pred_fallthru
        _
    $region32: #{_mot_loss_detr.2} parent=5 // pred_fallthru
      _
    %p349 = scmp.le.s32.totalorder 2, %s9
    // Predicated region
    $region37: #{_mot_loss_detr.2} parent=5 // pred_check
      %p350 = pneg %p349
    $region38: #{_mot_loss_detr.2} parent=5 // pred_check_branch
      %352 = sbr.rel (%p350) target = $region40
    $region39: #{_mot_loss_detr.2} parent=5 // pred_region
      %s353 = ssub.s32 %s9, 2
      // Predicated region
      $region41: #{_mot_loss_detr.2} parent=39 // pred_check
        %p354 = pneg %p132
      $region42: #{_mot_loss_detr.2} parent=39 // pred_check_branch
        %356 = sbr.rel (%p354) target = $region44
      $region43: #{_mot_loss_detr.2} parent=39 // pred_region
        %p357 = scmp.lt.s32.totalorder %s20, 1
        %s358 = scalar_select %p357, %s20, 1
        %p359 = scmp.lt.s32.totalorder %s21, 0
        %s360 = scalar_select %p359, %s21, 0
        %s361 = sadd.s32 %s360, %s358
        %s362 = smul.addr %s361, 8
        %s363 = scalar_lea.vmem %s3, %s362
      $region44: #{_mot_loss_detr.2} parent=39 // pred_fallthru
        _
    $region40: #{_mot_loss_detr.2} parent=5 // pred_fallthru
      _
  $region6: #{_mot_loss_detr.2} parent=0 // loop_footer
    %s13 = sadd.s32 1, %s9
  $region7: #{_mot_loss_detr.2} parent=0 // loop_footer_branch
    %8 = sbr.rel target = $region3
  $region8: #{_mot_loss_detr.2} parent=0 // loop_exit
    _

// kernel: _mot_loss_detr.3
$region0: #{_mot_loss_detr.3}
  #allocation0 [shape = 'u32[]', space=smem, size = 0x4, offset = 0x4, fixed_abs, tag = 'smem constant byte address 0x4 - core index']
  #allocation1 [shape = 'u32[144,128]{1,0:T(1,128)}', space=vmem, size = 0x12000, scoped, tag = 'internal scratch']
  %s0 = inlined_call_operand.vmem [shape: f32[2,128], index: 0, kind: input, shape index: {}]
  %s1 = inlined_call_operand.vmem [shape: f32[2,128], index: 1, kind: input, shape index: {}]
  %s2 = inlined_call_operand.vmem [shape: f32[2,128], index: 2, kind: input, shape index: {}]
  %s3 = inlined_call_operand.vmem [shape: f32[1,128], index: 3, kind: input, shape index: {}]
  %s4 = inlined_call_operand.vmem [shape: f32[1,128], index: 4, kind: input, shape index: {}]
  %s5 = inlined_call_operand.vmem [shape: f32[2], index: 5, kind: output, shape index: {}]
  %s6 = sld [smem:[#allocation0]]
  $region30: #{_mot_loss_detr.3} parent=0
    _
  %s8 = ssub.s32 1, %s6
  %s9 = scalar_select 0, %s8, %s6
  $region1: #{_mot_loss_detr.3} parent=0
    #allocation2 [shape = 'u8[512]{0}', space=smem, size = 0x200, scoped, tag = 'output window, operand 0, single buffered']
    #allocation3 [shape = 's32[1]{0}', space=sflag, size = 0x4, scoped, tag = 'scoped memory for _mot_loss_detr.3']
    %10 = vsyncpa [#allocation3], 0
    // Predicated region
    $region2: #{_mot_loss_detr.3} parent=1 // pred_check
      _
    $region3: #{_mot_loss_detr.3} parent=1 // pred_check_branch
      %12 = sbr.rel (0) target = $region5
    $region4: #{_mot_loss_detr.3} parent=1 // pred_region
      _
    $region5: #{_mot_loss_detr.3} parent=1 // pred_fallthru
      _
    // Predicated region
    $region6: #{_mot_loss_detr.3} parent=1 // pred_check
      _
    $region7: #{_mot_loss_detr.3} parent=1 // pred_check_branch
      %14 = sbr.rel (0) target = $region9
    $region8: #{_mot_loss_detr.3} parent=1 // pred_region
      _
    $region9: #{_mot_loss_detr.3} parent=1 // pred_fallthru
      _
    // Predicated region
    $region10: #{_mot_loss_detr.3} parent=1 // pred_check
      _
    $region11: #{_mot_loss_detr.3} parent=1 // pred_check_branch
      %16 = sbr.rel (0) target = $region13
    $region12: #{_mot_loss_detr.3} parent=1 // pred_region
      _
    $region13: #{_mot_loss_detr.3} parent=1 // pred_fallthru
      _
    // Predicated region
    $region14: #{_mot_loss_detr.3} parent=1 // pred_check
      _
    $region15: #{_mot_loss_detr.3} parent=1 // pred_check_branch
      %18 = sbr.rel (0) target = $region17
    $region16: #{_mot_loss_detr.3} parent=1 // pred_region
      _
    $region17: #{_mot_loss_detr.3} parent=1 // pred_fallthru
      _
    // Predicated region
    $region18: #{_mot_loss_detr.3} parent=1 // pred_check
      _
    $region19: #{_mot_loss_detr.3} parent=1 // pred_check_branch
      %20 = sbr.rel (0) target = $region21
    $region20: #{_mot_loss_detr.3} parent=1 // pred_region
      _
    $region21: #{_mot_loss_detr.3} parent=1 // pred_fallthru
      _
    %v21 = vld [vmem:[%s0] sm:$0x3]
    %v22 = vld [vmem:[%s1] sm:$0x3]
    %v23 = vld [vmem:[%s2] sm:$0x3]
    %v24 = vmax.f32 %v21, 0.0
    %v25 = vmul.f32 %v21, %v22
    %v26 = vsub.f32 %v24, %v25
    %v27 = vand.u32 2147483647, %v21
    %v28 = vsub.f32 0.0, %v27
    %v29 = vmul.f32 %v28, 1.442695
    %v30 = vpow.pop %v29
    %v31 = vadd.f32 %v30, 1.0
    %v32 = vlog2.pop %v31
    %v33 = vmul.f32 %v32, 0.6931472
    %v34 = vmul.f32 -0.5, %v30
    %v35 = vadd.f32 %v34, 1.0
    %v36 = vmul.f32 %v35, %v30
    %v37 = vand.u32 2147483647, %v30
    %vm38 = vcmp.lt.f32.partialorder %v37, 0.0004427343
    %v39 = vsel %vm38, %v36, %v33
    %v40 = vadd.f32 %v26, %v39
    %v41 = vmul.f32 %v40, %v23
    %v42 = vld [vmem:[%s3] sm:$0x1]
    %v43 = vld [vmem:[%s4] sm:$0x1]
    %v44 = vsub.f32 %v42, %v43
    %v45 = vand.u32 2147483647, %v44
    %vm46 = vcmask 1040384
    %v47 = vsel %vm46, %v45, 0.0
    %48 = vadd.xlane.f32.xlu0 %v47
    %v49 = vpop.xlane.xlu0 %48
    %v50 = vrot.slane %v49, 4
    %v51 = vadd.f32 %v49, %v50
    %v52 = vrot.slane %v51, 2
    %v53 = vadd.f32 %v51, %v52
    %v54 = vrot.slane %v53, 1
    %v55 = vadd.f32 %v53, %v54
    %s56 = vtos %v55
    %s57 = smul.f32 %s56, 0.125
    %s58 = scalar_lea.smem [#allocation2], 0
    %59 = sst [smem:[%s58]] %s57
    %vm60 = vcmask 1041408
    %v61 = vsel %vm60, %v41, 0.0
    %62 = vadd.xlane.f32.xlu0 %v61
    %v63 = vpop.xlane.xlu0 %62
    %v64 = vrot.slane %v63, 4
    %v65 = vadd.f32 %v63, %v64
    %v66 = vrot.slane %v65, 2
    %v67 = vadd.f32 %v65, %v66
    %v68 = vrot.slane %v67, 1
    %v69 = vadd.f32 %v67, %v68
    %s70 = vtos %v69
    %s71 = smul.f32 %s70, 0.0625
    %s72 = scalar_lea.smem [#allocation2], 1
    %73 = sst [smem:[%s72]] %s71
    // Predicated region
    $region22: #{_mot_loss_detr.3} parent=1 // pred_check
      _
    $region23: #{_mot_loss_detr.3} parent=1 // pred_check_branch
      %75 = sbr.rel (0) target = $region25
    $region24: #{_mot_loss_detr.3} parent=1 // pred_region
      %s77 = ssub.s32 16, 16
      %78 = vsyncadd [#allocation3], %s77
      %s80 = sshll.u32 %s5, 4
      %s81 = int_to_ptr.vmem [resolvable:$true] %s80
      %83 = dma.smem_to_vmem [#allocation2], 16, %s81, [#allocation3]
    $region25: #{_mot_loss_detr.3} parent=1 // pred_fallthru
      _
    // Predicated region
    $region26: #{_mot_loss_detr.3} parent=1 // pred_check
      _
    $region27: #{_mot_loss_detr.3} parent=1 // pred_check_branch
      %85 = sbr.rel (0) target = $region29
    $region28: #{_mot_loss_detr.3} parent=1 // pred_region
      %86 = dma.done [#allocation3], 16
    $region29: #{_mot_loss_detr.3} parent=1 // pred_fallthru
      _
    %87 = sfence
    %88 = vsyncpa [#allocation3], 1

</llo_original>
